<compile_context>
chip_gen: v7x
topology: tpu7x:2x2x1
jax: 0.10.0
libtpu: 0.0.40
codegen_flags: <defaults>
</compile_context>

<pallas_src>
import functools

import jax
import jax.numpy as jnp
from jax import lax
from jax.experimental import pallas as pl
from jax.experimental.pallas import tpu as pltpu

LANE = 128


def force_pair(v):
    if isinstance(v, tuple):
        assert len(v) == 2
        return (int(v[0]), int(v[1]))
    return (int(v), int(v))


def _phase_conv_kernel(x_ref, w_ref, o_ref):
    # x_ref: (1, K, TP)       im2col'ed input, pixels on the lane axis
    # w_ref: (OC_all, K)      phase-stacked, pre-flipped sub-kernels
    # o_ref: (1, OC_all, TP)  phase-stacked output, pixels on the lane axis
    o_ref[0] = jnp.dot(w_ref[...], x_ref[0],
                       preferred_element_type=jnp.float32).astype(o_ref.dtype)


@functools.partial(jax.jit, static_argnames=("stride", "padding", "operand_dtype"))
def conv_transpose2d(x, weight, stride=1, padding=0, *, operand_dtype=None):
    """x: (B, IC, H, W) float32, weight: (IC, OC, KH, KW) float32 (PyTorch layout)."""
    sh, sw = force_pair(stride)
    ph, pw = force_pair(padding)
    B, IC, H, W = x.shape
    IC2, OC, KH, KW = weight.shape
    assert IC == IC2, "in_channels mismatch"
    assert KH - 1 - ph >= 0 and KW - 1 - pw >= 0, \
        "total amount padded should be positive"

    OH = (H - 1) * sh + KH - 2 * ph
    OW = (W - 1) * sw + KW - 2 * pw

    # ---- phase (sub-pixel) decomposition geometry ----------------------------
    # Output phase (r, c) = ((oh+ph) % sh, (ow+pw) % sw) is a stride-1 conv of
    # the ORIGINAL (un-dilated) input with an m_h x m_w sub-kernel.
    m_h = -(-KH // sh)                      # taps per phase (height)
    m_w = -(-KW // sw)                      # taps per phase (width)
    q_h = H + (KH - ph - 1) // sh           # per-phase rows covering [0, OH)
    q_w = W + (KW - pw - 1) // sw           # per-phase cols covering [0, OW)
    npix = q_h * q_w
    K = m_h * m_w * IC
    oc_all = sh * sw * OC

    # ---- pixel tiling ---------------------------------------------------------
    lane_groups = -(-npix // LANE)
    MAX_TILE_LANES = 16                     # <= 2048 px/tile: bounds VMEM/vregs for big maps
    n_tiles = -(-lane_groups // MAX_TILE_LANES)
    if B == 1 and lane_groups >= 2:
        n_tiles = max(n_tiles, 2)           # keep both v7x TensorCores fed for B==1
    tile_pix = -(-lane_groups // n_tiles) * LANE
    npix_pad = n_tiles * tile_pix

    # ---- wrapper-side im2col (stays NCHW; zero halo top/left) ----------------
    hp = q_h + m_h - 1
    wp = q_w + m_w - 1
    x_sp = jnp.pad(x, ((0, 0), (0, 0),
                       (m_h - 1, hp - (m_h - 1) - H),
                       (m_w - 1, wp - (m_w - 1) - W)))
    taps = [x_sp[:, :, mh:mh + q_h, mw:mw + q_w].reshape(B, IC, npix)
            for mh in range(m_h) for mw in range(m_w)]
    x_col = jnp.concatenate(taps, axis=1)                  # (B, K, npix), tap-major K
    x_col = jnp.pad(x_col, ((0, 0), (0, 0), (0, npix_pad - npix)))

    # ---- phase-stacked sub-kernels --------------------------------------------
    # w_t[(r*sw + c)*OC + oc, (mh*m_w + mw)*IC + ic]
    #   = weight[ic, oc, r + (m_h-1-mh)*sh, c + (m_w-1-mw)*sw]   (0 if OOB)
    wpad = jnp.zeros((IC, OC, m_h * sh, m_w * sw), weight.dtype)
    wpad = wpad.at[:, :, :KH, :KW].set(weight)
    wpad = wpad.reshape(IC, OC, m_h, sh, m_w, sw)[:, :, ::-1, :, ::-1, :]
    w_all = jnp.transpose(wpad, (2, 4, 0, 3, 5, 1)).reshape(K, oc_all)
    w_t = w_all.T                                           # (oc_all, K)

    if operand_dtype is not None:            # e.g. jnp.bfloat16 on v6e/v7x
        x_col = x_col.astype(operand_dtype)
        w_t = w_t.astype(operand_dtype)

    steps = B * n_tiles
    flops = 2 * B * npix_pad * K * oc_all
    bytes_accessed = (x_col.size * x_col.dtype.itemsize
                      + steps * w_t.size * w_t.dtype.itemsize
                      + B * oc_all * npix_pad * jnp.dtype(x.dtype).itemsize)

    out_flat = pl.pallas_call(
        _phase_conv_kernel,
        out_shape=jax.ShapeDtypeStruct((B, oc_all, npix_pad), x.dtype),
        grid_spec=pltpu.PrefetchScalarGridSpec(
            num_scalar_prefetch=0,
            grid=(B, n_tiles),
            in_specs=[
                pl.BlockSpec((1, K, tile_pix), lambda b, t: (b, 0, t)),
                pl.BlockSpec((oc_all, K), lambda b, t: (0, 0)),
            ],
            out_specs=pl.BlockSpec((1, oc_all, tile_pix), lambda b, t: (b, 0, t)),
        ),
        compiler_params=pltpu.CompilerParams(
            dimension_semantics=("parallel", "parallel")),
        cost_estimate=pl.CostEstimate(
            flops=flops, transcendentals=0, bytes_accessed=bytes_accessed),
    )(x_col, w_t)

    # ---- de-interleave phases, crop, NCHW out ---------------------------------
    out = out_flat[:, :, :npix].reshape(B, sh, sw, OC, q_h, q_w)
    out = jnp.transpose(out, (0, 3, 4, 1, 5, 2)).reshape(B, OC, q_h * sh, q_w * sw)
    return out[:, :, ph:ph + OH, pw:pw + OW]


def conv_transpose2d_ref(x, weight, stride=1, padding=0):
    """Pure-JAX reference mirroring the PyTorch module semantics."""
    sh, sw = force_pair(stride)
    ph, pw = force_pair(padding)
    IC, OC, KH, KW = weight.shape
    w_conv = jnp.transpose(weight[:, :, ::-1, ::-1], (1, 0, 2, 3))   # (OC, IC, KH, KW)
    return lax.conv_general_dilated(
        x, w_conv,
        window_strides=(1, 1),
        padding=[(KH - 1 - ph, KH - 1 - ph), (KW - 1 - pw, KW - 1 - pw)],
        lhs_dilation=(sh, sw),
        dimension_numbers=("NCHW", "OIHW", "NCHW"),
    )


if __name__ == "__main__":
    configs = [
        # (B, IC, OC, H, W, kernel, stride, padding)
        (2, 4, 8, 16, 16, 4, 2, 1),    # DCGAN-style upsampling block (primary)
        (2, 8, 16, 8, 8, 4, 2, 1),     # deeper block, smaller map
        (1, 4, 8, 7, 7, 3, 2, 1),      # odd kernel: some phase taps zero-padded
    ]
    key = jax.random.PRNGKey(0)
    for idx, (B, ic, oc, H, W, k, s, p) in enumerate(configs):
        key, kx, kw_key = jax.random.split(key, 3)
        kh, kw = force_pair(k)
        # Deterministic init matching __init__: sf * (2 * rand(IC, OC, KH, KW) - 1)
        sf = 1.0 / (oc * kh * kw) ** 0.5
        weight = sf * (2.0 * jax.random.uniform(
            kw_key, (ic, oc, kh, kw), dtype=jnp.float32) - 1.0)
        x = jax.random.normal(kx, (B, ic, H, W), dtype=jnp.float32)

        out = jax.block_until_ready(conv_transpose2d(x, weight, stride=s, padding=p))
        ref = jax.block_until_ready(conv_transpose2d_ref(x, weight, stride=s, padding=p))

        assert out.shape == ref.shape, (out.shape, ref.shape)
        err = float(jnp.max(jnp.abs(out - ref)))
        assert jnp.allclose(out, ref, atol=1e-5, rtol=1e-5), \
            f"mismatch for config {(B, ic, oc, H, W, k, s, p)}: max abs err {err}"

        if idx == 0:
            # bf16-operand path (recommended default on v6e/v7x): f32 accumulation,
            # looser tolerance — operands are rounded to bf16 before the MXU.
            out_bf = jax.block_until_ready(
                conv_transpose2d(x, weight, stride=s, padding=p,
                                 operand_dtype=jnp.bfloat16))
            err_bf = float(jnp.max(jnp.abs(out_bf - ref)))
            assert jnp.allclose(out_bf, ref, atol=5e-2, rtol=5e-2), \
                f"bf16-operand mismatch: max abs err {err_bf}"

    print("KERNEL_OK")
</pallas_src>

<mosaic_0001>
module attributes {stable_mosaic.version = 11 : i64} {
  func.func @_phase_conv_kernel(%arg0: i32, %arg1: i32, %arg2: memref<1x16x384xf32, #tpu.memory_space<vmem>>, %arg3: memref<32x16xf32, #tpu.memory_space<vmem>>, %arg4: memref<1x32x384xf32, #tpu.memory_space<vmem>>) attributes {dimension_semantics = [#tpu.dimension_semantics<parallel>, #tpu.dimension_semantics<parallel>], iteration_bounds = array<i64: 2, 1>, scalar_prefetch = 0 : i64, scratch_operands = 0 : i64, tpu.core_type = #tpu.core_type<tc>, window_params = [{transform_indices = @transform_0, window_bounds = array<i64: 1, 16, 384>}, {pipeline_mode = #tpu.pipeline_mode<synchronous>, transform_indices = @transform_1, window_bounds = array<i64: 32, 16>}, {transform_indices = @transform_2, window_bounds = array<i64: 1, 32, 384>}]} {
    %c0 = arith.constant 0 : index
    %c0_0 = arith.constant 0 : index
    %0 = vector.load %arg3[%c0, %c0_0] : memref<32x16xf32, #tpu.memory_space<vmem>>, vector<32x16xf32>
    %c0_1 = arith.constant 0 : index
    %c0_2 = arith.constant 0 : index
    %c0_3 = arith.constant 0 : index
    %1 = vector.load %arg2[%c0_1, %c0_2, %c0_3] : memref<1x16x384xf32, #tpu.memory_space<vmem>>, vector<1x16x384xf32>
    %2 = vector.shape_cast %1 : vector<1x16x384xf32> to vector<16x384xf32>
    %cst = arith.constant dense<0.000000e+00> : vector<32x384xf32>
    %3 = tpu.matmul %0, %2, %cst {dimension_numbers = #tpu.dot_dimension_numbers<[1], [0], [0], [1], [0, 0, 1, 1], [], []>} : vector<32x16xf32>, vector<16x384xf32>, vector<32x384xf32> -> vector<32x384xf32>
    %c0_4 = arith.constant 0 : index
    %c0_5 = arith.constant 0 : index
    %c0_6 = arith.constant 0 : index
    %4 = vector.load %arg4[%c0_4, %c0_5, %c0_6] : memref<1x32x384xf32, #tpu.memory_space<vmem>>, vector<1x32x384xf32>
    %5 = vector.shape_cast %4 : vector<1x32x384xf32> to vector<32x384xf32>
    %6 = vector.shape_cast %3 : vector<32x384xf32> to vector<1x32x384xf32>
    tpu.vector_store %arg4[%c0_4, %c0_5, %c0_6], %6 {strides = array<i32>} : memref<1x32x384xf32, #tpu.memory_space<vmem>>, vector<1x32x384xf32>,
    return
  }
  func.func @transform_0(%arg0: i32, %arg1: i32) -> (i32, i32, i32) {
    %c0_i32 = arith.constant 0 : i32
    %c0_i32_0 = arith.constant 0 : i32
    return %arg0, %c0_i32, %arg1 : i32, i32, i32
  }
  func.func @transform_1(%arg0: i32, %arg1: i32) -> (i32, i32) {
    %c0_i32 = arith.constant 0 : i32
    %c0_i32_0 = arith.constant 0 : i32
    %c0_i32_1 = arith.constant 0 : i32
    return %c0_i32, %c0_i32_0 : i32, i32
  }
  func.func @transform_2(%arg0: i32, %arg1: i32) -> (i32, i32, i32) {
    %c0_i32 = arith.constant 0 : i32
    %c0_i32_0 = arith.constant 0 : i32
    return %arg0, %c0_i32, %arg1 : i32, i32, i32
  }
}

</mosaic_0001>

<llo_original>
// kernel: conv_transpose2d.1
$region0: #{conv_transpose2d.1}
  #allocation0 [shape = 'u32[]', space=smem, size = 0x4, offset = 0x4, fixed_abs, tag = 'smem constant byte address 0x4 - core index']
  #allocation1 [shape = 'u32[144,128]{1,0:T(1,128)}', space=vmem, size = 0x12000, scoped, tag = 'internal scratch']
  %s0 = inlined_call_operand.vmem [shape: f32[2,16,384], index: 0, kind: input, shape index: {}]
  %s1 = inlined_call_operand.vmem [shape: f32[32,16], index: 1, kind: input, shape index: {}]
  %s2 = inlined_call_operand.vmem [shape: f32[2,32,384], index: 2, kind: output, shape index: {}]
  %s3 = sld [smem:[#allocation0]]
  $region41: #{conv_transpose2d.1} parent=0
    _
  %s5 = ssub.s32 1, %s3
  %s6 = scalar_select 0, %s5, %s3
  loop: start=0, step=1, limit=4
  $region2: #{conv_transpose2d.1} parent=0 // loop_pre_header
    _
  $region3: #{conv_transpose2d.1} parent=0 // loop_header
    %s8 = sphi 0, %s12
    %p9 = scmp.ge.s32.totalorder %s8, 4
    %s15 = sphi 0, %s27
    %s16 = sphi 0, %s23
    %s17 = sphi 0, %s15
    %s18 = sphi 0, %s16
    %s19 = sphi 0, %s17
    %s20 = sphi 0, %s18
    %s32 = sphi 0, %s34
    %s35 = sphi 0, %s32
    %s36 = sphi 0, %s35
    %s52 = sphi 0, %s36
    %s56 = sphi 0, %s56
    %s58 = sphi 0, %s56
    %s59 = sphi 0, %s58
    %s73 = sphi 0, %s59
    %s81 = sphi 0, %s83
    %s84 = sphi 0, %s81
    %s85 = sphi 0, %s84
    %s101 = sphi 0, %s85
  $region4: #{conv_transpose2d.1} parent=0 // loop_header_branch
    %11 = sbr.rel (%p9) target = $region8
  $region5: #{conv_transpose2d.1} parent=0 // loop_body
    %s13 = ssub.s32 %s8, 1
    %s14 = ssub.s32 %s8, 2
    %s21 = sadd.s32 1, %s16
    %p22 = scmp.ge.s32.totalorder %s21, 1
    %s23 = scalar_select %p22, 0, %s21
    %s24 = sadd.s32 1, %s15
    %s25 = scalar_select %p22, %s24, %s15
    %p26 = scmp.ge.s32.totalorder %s25, 2
    %s27 = scalar_select %p26, 0, %s25
    %s28 = ssub.s32 %s15, %s27
    %s29 = ssub.s32 %s16, %s23
    %s30 = sor.u32 %s28, %s29
    %p31 = scmp.eq.s32.totalorder %s30, 0
    %s33 = sadd.s32 %s32, 1
    %s34 = scalar_select %p31, %s32, %s33
    %p37 = pneg %p31
    %p38 = scmp.eq.s32.totalorder %s8, 1
    %p39 = por %p37, %p38
    %p40 = scmp.ne.s32.totalorder %s32, %s35
    %p41 = scmp.eq.s32.totalorder %s8, 0
    %p42 = por %p40, %p41
    %p43 = scmp.ne.s32.totalorder %s32, %s35
    %p44 = scmp.eq.s32.totalorder %s13, 1
    %p45 = por %p43, %p44
    %p46 = scmp.ne.s32.totalorder %s35, %s36
    %p47 = scmp.eq.s32.totalorder %s13, 0
    %p48 = por %p46, %p47
    %p49 = scmp.ne.s32.totalorder %s35, %s36
    %p50 = scmp.eq.s32.totalorder %s14, 1
    %p51 = por %p49, %p50
    %p53 = scmp.ne.s32.totalorder %s36, %s52
    %p54 = scmp.eq.s32.totalorder %s14, 0
    %p55 = por %p53, %p54
    %s57 = sadd.s32 %s56, 1
    %p60 = scmp.eq.s32.totalorder %s8, 1
    %p61 = scmp.ne.s32.totalorder %s56, %s58
    %p62 = scmp.eq.s32.totalorder %s8, 0
    %p63 = por %p61, %p62
    %p64 = scmp.ne.s32.totalorder %s56, %s58
    %p65 = scmp.eq.s32.totalorder %s13, 1
    %p66 = por %p64, %p65
    %p67 = scmp.ne.s32.totalorder %s58, %s59
    %p68 = scmp.eq.s32.totalorder %s13, 0
    %p69 = por %p67, %p68
    %p70 = scmp.ne.s32.totalorder %s58, %s59
    %p71 = scmp.eq.s32.totalorder %s14, 1
    %p72 = por %p70, %p71
    %p74 = scmp.ne.s32.totalorder %s59, %s73
    %p75 = scmp.eq.s32.totalorder %s14, 0
    %p76 = por %p74, %p75
    %s77 = ssub.s32 %s15, %s27
    %s78 = ssub.s32 %s16, %s23
    %s79 = sor.u32 %s77, %s78
    %p80 = scmp.eq.s32.totalorder %s79, 0
    %s82 = sadd.s32 %s81, 1
    %s83 = scalar_select %p80, %s81, %s82
    %p86 = pneg %p80
    %p87 = scmp.eq.s32.totalorder %s8, 1
    %p88 = por %p86, %p87
    %p89 = scmp.ne.s32.totalorder %s81, %s84
    %p90 = scmp.eq.s32.totalorder %s8, 0
    %p91 = por %p89, %p90
    %p92 = scmp.ne.s32.totalorder %s81, %s84
    %p93 = scmp.eq.s32.totalorder %s13, 1
    %p94 = por %p92, %p93
    %p95 = scmp.ne.s32.totalorder %s84, %s85
    %p96 = scmp.eq.s32.totalorder %s13, 0
    %p97 = por %p95, %p96
    %p98 = scmp.ne.s32.totalorder %s84, %s85
    %p99 = scmp.eq.s32.totalorder %s14, 1
    %p100 = por %p98, %p99
    %p102 = scmp.ne.s32.totalorder %s85, %s101
    %p103 = scmp.eq.s32.totalorder %s14, 0
    %p104 = por %p102, %p103
    %p105 = scmp.le.s32.totalorder 1, %s8
    %p106 = scmp.lt.s32.totalorder %s8, 3
    %p107 = pnand %p105, %p106
    %p108 = pneg %p107
    // Predicated region
    $region9: #{conv_transpose2d.1} parent=5 // pred_check
      _
    $region10: #{conv_transpose2d.1} parent=5 // pred_check_branch
      %110 = sbr.rel (%p107) target = $region12
    $region11: #{conv_transpose2d.1} parent=5 // pred_region
      %s111 = ssub.s32 %s8, 1
      // Predicated region
      $region13: #{conv_transpose2d.1} parent=11 // pred_check
        %p112 = pneg %p69
      $region14: #{conv_transpose2d.1} parent=11 // pred_check_branch
        %114 = sbr.rel (%p112) target = $region16
      $region15: #{conv_transpose2d.1} parent=11 // pred_region
        _
      $region16: #{conv_transpose2d.1} parent=11 // pred_fallthru
        _
    $region12: #{conv_transpose2d.1} parent=5 // pred_fallthru
      _
    %p115 = scmp.lt.s32.totalorder %s8, 2
    // Predicated region
    $region17: #{conv_transpose2d.1} parent=5 // pred_check
      %p116 = pneg %p115
    $region18: #{conv_transpose2d.1} parent=5 // pred_check_branch
      %118 = sbr.rel (%p116) target = $region20
    $region19: #{conv_transpose2d.1} parent=5 // pred_region
      // Predicated region
      $region21: #{conv_transpose2d.1} parent=19 // pred_check
        %p119 = pneg %p42
      $region22: #{conv_transpose2d.1} parent=19 // pred_check_branch
        %121 = sbr.rel (%p119) target = $region24
      $region23: #{conv_transpose2d.1} parent=19 // pred_region
        %s122 = smul.u32 3, %s16
        %p123 = scmp.lt.s32.totalorder %s15, 1
        %s124 = scalar_select %p123, %s15, 1
        %p125 = scmp.lt.s32.totalorder %s122, 2
        %s126 = scalar_select %p125, %s122, 2
        %s127 = smul.addr %s124, 6
        %s128 = sadd.s32 %s126, %s127
        %s129 = smul.addr %s128, 8
        %s130 = scalar_lea.vmem %s0, %s129
        %s131 = smul.u32 3, %s16
      $region24: #{conv_transpose2d.1} parent=19 // pred_fallthru
        _
    $region20: #{conv_transpose2d.1} parent=5 // pred_fallthru
      _
    %p132 = scmp.le.s32.totalorder 1, %s8
    %p133 = scmp.lt.s32.totalorder %s8, 3
    %p134 = pnand %p132, %p133
    %p135 = pneg %p134
    // Predicated region
    $region25: #{conv_transpose2d.1} parent=5 // pred_check
      _
    $region26: #{conv_transpose2d.1} parent=5 // pred_check_branch
      %137 = sbr.rel (%p134) target = $region28
    $region27: #{conv_transpose2d.1} parent=5 // pred_region
      %s138 = ssub.s32 %s8, 1
      %s139 = smul.u32 3, %s18
      %p140 = scmp.lt.s32.totalorder %s17, 1
      %s141 = scalar_select %p140, %s17, 1
      %p142 = scmp.lt.s32.totalorder %s139, 2
      %s143 = scalar_select %p142, %s139, 2
      %s144 = smul.addr %s141, 6
      %s145 = sadd.s32 %s143, %s144
      %s146 = smul.addr %s145, 8
      %s147 = scalar_lea.vmem %s0, %s146
      %p148 = pneg %p48
      %p149 = pneg %p45
      %p150 = pneg %p69
      %p151 = pneg %p66
      %p152 = pneg %p97
      %p153 = pneg %p94
      %s154 = smul.u32 3, %s18
      %p155 = scmp.lt.s32.totalorder %s17, 1
      %s156 = scalar_select %p155, %s17, 1
      %p157 = scmp.lt.s32.totalorder %s154, 2
      %s158 = scalar_select %p157, %s154, 2
      %s159 = smul.addr %s156, 12
      %s160 = sadd.s32 %s158, %s159
      %s161 = smul.addr %s160, 8
      %s162 = scalar_lea.vmem %s2, %s161
      %s163 = smul.u32 3, %s18
      %p164 = scmp.lt.s32.totalorder %s17, 1
      %s165 = scalar_select %p164, %s17, 1
      %p166 = scmp.lt.s32.totalorder %s163, 2
      %s167 = scalar_select %p166, %s163, 2
      %s168 = smul.addr %s165, 6
      %s169 = sadd.s32 %s167, %s168
      %s170 = smul.addr %s169, 8
      %s171 = scalar_lea.vmem %s0, %s170
      %s172 = smul.u32 3, %s18
      %s173 = smul.u32 3, %s18
      %p174 = scmp.lt.s32.totalorder %s17, 1
      %s175 = scalar_select %p174, %s17, 1
      %p176 = scmp.lt.s32.totalorder %s173, 2
      %s177 = scalar_select %p176, %s173, 2
      %s178 = smul.addr %s175, 12
      %s179 = sadd.s32 %s177, %s178
      %s180 = smul.addr %s179, 8
      %s181 = scalar_lea.vmem %s2, %s180
      %s182 = smul.u32 3, %s18
      %v183 = vld [vmem:[%s1] sm:$0xff]
      %v184 = vld [vmem:[%s1 + $0x8] sm:$0xff]
      %v185 = vld [vmem:[%s1 + $0x10] sm:$0xff]
      %v186 = vld [vmem:[%s1 + $0x18] sm:$0xff]
      %v187 = vld [vmem:[%s171] sm:$0xff]
      %v188 = vld [vmem:[%s171 + $0x8] sm:$0xff]
      %v189 = vld [vmem:[%s171 + $0x10] sm:$0xff]
      %v190 = vld [vmem:[%s171 + $0x18] sm:$0xff]
      %v191 = vld [vmem:[%s171 + $0x20] sm:$0xff]
      %v192 = vld [vmem:[%s171 + $0x28] sm:$0xff]
      %vm193 = vcmask 130048
      %v195 = vsel %vm193, %v183, 0
      %v198 = vsel %vm193, %v184, 0
      %v201 = vsel %vm193, %v185, 0
      %v204 = vsel %vm193, %v186, 0
      %206 = vmatprep.subr.mxu0 %v188
      %207 = vmatpush1.msra.mxu0 %v187
      %208 = vmatprep.subr.mxu0 %v191
      %209 = vmatpush1.msra.mxu0 %v190
      %210 = vmatprep.subr.mxu0 0.0
      %211 = vmatpush1.msra.mxu0 0.0
      %212 = vmatprep.subr.mxu0 0.0
      %213 = vmatpush1.msra.mxu0 0.0
      %214 = vmatprep.subr.mxu0 0.0
      %215 = vmatpush1.msra.mxu0 0.0
      %216 = vmatprep.subr.mxu0 0.0
      %217 = vmatpush1.msra.mxu0 0.0
      %218 = vmatprep.subr.mxu0 0.0
      %219 = vmatpush1.msra.mxu0 0.0
      %220 = vmatprep.subr.mxu0 0.0
      %221 = vmatpush1.msra.mxu0 0.0
      %222 = vmatprep.subr.mxu0 0.0
      %223 = vmatpush1.msra.mxu0 0.0
      %224 = vmatprep.subr.mxu0 0.0
      %225 = vmatpush1.msra.mxu0 0.0
      %226 = vmatprep.subr.mxu0 0.0
      %227 = vmatpush1.msra.mxu0 0.0
      %228 = vmatprep.subr.mxu0 0.0
      %229 = vmatpush1.msra.mxu0 0.0
      %230 = vmatprep.subr.mxu0 0.0
      %231 = vmatpush1.msra.mxu0 0.0
      %232 = vmatprep.subr.mxu0 0.0
      %233 = vmatpush1.msra.mxu0 0.0
      %234 = vmatprep.subr.mxu0 0.0
      %235 = vmatpush1.msra.mxu0 0.0
      %236 = vmatprep.subr.mxu0 0.0
      %237 = vmatpush1.msra.mxu0 0.0
      %238 = vmatprep.subr.mxu0 0.0
      %239 = vmatpush1.msra.mxu0 0.0
      %240 = vmatprep.subr.mxu0 0.0
      %241 = vmatpush1.msra.mxu0 0.0
      %242 = vmatprep.subr.mxu0 0.0
      %243 = vmatpush1.msra.mxu0 0.0
      %244 = vmatprep.subr.mxu0 0.0
      %245 = vmatpush1.msra.mxu0 0.0
      %246 = vmatprep.subr.mxu0 0.0
      %247 = vmatpush1.msra.mxu0 0.0
      %248 = vmatprep.subr.mxu0 0.0
      %249 = vmatpush1.msra.mxu0 0.0
      %250 = vmatprep.subr.mxu0 0.0
      %251 = vmatpush1.msra.mxu0 0.0
      %252 = vmatprep.subr.mxu0 0.0
      %253 = vmatpush1.msra.mxu0 0.0
      %254 = vmatprep.subr.mxu0 0.0
      %255 = vmatpush1.msra.mxu0 0.0
      %256 = vmatprep.subr.mxu0 0.0
      %257 = vmatpush1.msra.mxu0 0.0
      %258 = vmatprep.subr.mxu0 0.0
      %259 = vmatpush1.msra.mxu0 0.0
      %260 = vmatprep.subr.mxu0 0.0
      %261 = vmatpush1.msra.mxu0 0.0
      %262 = vmatprep.subr.mxu0 0.0
      %263 = vmatpush1.msra.mxu0 0.0
      %264 = vmatprep.subr.mxu0 0.0
      %265 = vmatpush1.msra.mxu0 0.0
      %266 = vmatprep.subr.mxu0 0.0
      %267 = vmatpush1.msra.mxu0 0.0
      %268 = vmatprep.subr.mxu0 0.0
      %269 = vmatpush1.msra.mxu0 0.0
      %270 = vmatprep.mubr.f32.mxu0 0.0
      %271 = vmatmul.mubr.f32.gmra.mrb[0].mxu0 %v195
      %v272 = vpop.f32.mrb[0].mxu0
      %v273 = vadd.f32 0.0, %v272
      %v274 = vpop.f32.mrb[0].mxu0
      %v275 = vadd.f32 0.0, %v274
      %276 = vmatprep.mubr.f32.mxu0 0.0
      %277 = vmatmul.mubr.f32.gmra.mrb[0].mxu0 %v198
      %v278 = vpop.f32.mrb[0].mxu0
      %v279 = vadd.f32 0.0, %v278
      %v280 = vpop.f32.mrb[0].mxu0
      %v281 = vadd.f32 0.0, %v280
      %282 = vmatprep.mubr.f32.mxu0 0.0
      %283 = vmatmul.mubr.f32.gmra.mrb[0].mxu0 %v201
      %v284 = vpop.f32.mrb[0].mxu0
      %v285 = vadd.f32 0.0, %v284
      %v286 = vpop.f32.mrb[0].mxu0
      %v287 = vadd.f32 0.0, %v286
      %288 = vmatprep.mubr.f32.mxu0 0.0
      %289 = vmatmul.mubr.f32.gmra.mrb[0].mxu0 %v204
      %v290 = vpop.f32.mrb[0].mxu0
      %v291 = vadd.f32 0.0, %v290
      %v292 = vpop.f32.mrb[0].mxu0
      %v293 = vadd.f32 0.0, %v292
      %294 = vdwg.mxu0
      %295 = vmatprep.subr.mxu0 0.0
      %296 = vmatpush1.msra.mxu0 %v189
      %297 = vmatprep.subr.mxu0 0.0
      %298 = vmatpush1.msra.mxu0 %v192
      %299 = vmatprep.subr.mxu0 0.0
      %300 = vmatpush1.msra.mxu0 0.0
      %301 = vmatprep.subr.mxu0 0.0
      %302 = vmatpush1.msra.mxu0 0.0
      %303 = vmatprep.subr.mxu0 0.0
      %304 = vmatpush1.msra.mxu0 0.0
      %305 = vmatprep.subr.mxu0 0.0
      %306 = vmatpush1.msra.mxu0 0.0
      %307 = vmatprep.subr.mxu0 0.0
      %308 = vmatpush1.msra.mxu0 0.0
      %309 = vmatprep.subr.mxu0 0.0
      %310 = vmatpush1.msra.mxu0 0.0
      %311 = vmatprep.subr.mxu0 0.0
      %312 = vmatpush1.msra.mxu0 0.0
      %313 = vmatprep.subr.mxu0 0.0
      %314 = vmatpush1.msra.mxu0 0.0
      %315 = vmatprep.subr.mxu0 0.0
      %316 = vmatpush1.msra.mxu0 0.0
      %317 = vmatprep.subr.mxu0 0.0
      %318 = vmatpush1.msra.mxu0 0.0
      %319 = vmatprep.subr.mxu0 0.0
      %320 = vmatpush1.msra.mxu0 0.0
      %321 = vmatprep.subr.mxu0 0.0
      %322 = vmatpush1.msra.mxu0 0.0
      %323 = vmatprep.subr.mxu0 0.0
      %324 = vmatpush1.msra.mxu0 0.0
      %325 = vmatprep.subr.mxu0 0.0
      %326 = vmatpush1.msra.mxu0 0.0
      %327 = vmatprep.subr.mxu0 0.0
      %328 = vmatpush1.msra.mxu0 0.0
      %329 = vmatprep.subr.mxu0 0.0
      %330 = vmatpush1.msra.mxu0 0.0
      %331 = vmatprep.subr.mxu0 0.0
      %332 = vmatpush1.msra.mxu0 0.0
      %333 = vmatprep.subr.mxu0 0.0
      %334 = vmatpush1.msra.mxu0 0.0
      %335 = vmatprep.subr.mxu0 0.0
      %336 = vmatpush1.msra.mxu0 0.0
      %337 = vmatprep.subr.mxu0 0.0
      %338 = vmatpush1.msra.mxu0 0.0
      %339 = vmatprep.subr.mxu0 0.0
      %340 = vmatpush1.msra.mxu0 0.0
      %341 = vmatprep.subr.mxu0 0.0
      %342 = vmatpush1.msra.mxu0 0.0
      %343 = vmatprep.subr.mxu0 0.0
      %344 = vmatpush1.msra.mxu0 0.0
      %345 = vmatprep.subr.mxu0 0.0
      %346 = vmatpush1.msra.mxu0 0.0
      %347 = vmatprep.subr.mxu0 0.0
      %348 = vmatpush1.msra.mxu0 0.0
      %349 = vmatprep.subr.mxu0 0.0
      %350 = vmatpush1.msra.mxu0 0.0
      %351 = vmatprep.subr.mxu0 0.0
      %352 = vmatpush1.msra.mxu0 0.0
      %353 = vmatprep.subr.mxu0 0.0
      %354 = vmatpush1.msra.mxu0 0.0
      %355 = vmatprep.subr.mxu0 0.0
      %356 = vmatpush1.msra.mxu0 0.0
      %357 = vmatprep.subr.mxu0 0.0
      %358 = vmatpush1.msra.mxu0 0.0
      %359 = vmatprep.mubr.f32.mxu0 0.0
      %360 = vmatmul.mubr.f32.gmra.mrb[0].mxu0 %v195
      %v361 = vpop.f32.mrb[0].mxu0
      %v362 = vadd.f32 0.0, %v361
      %v363 = vpop.f32.mrb[0].mxu0
      %364 = vmatprep.mubr.f32.mxu0 0.0
      %365 = vmatmul.mubr.f32.gmra.mrb[0].mxu0 %v198
      %v366 = vpop.f32.mrb[0].mxu0
      %v367 = vadd.f32 0.0, %v366
      %v368 = vpop.f32.mrb[0].mxu0
      %369 = vmatprep.mubr.f32.mxu0 0.0
      %370 = vmatmul.mubr.f32.gmra.mrb[0].mxu0 %v201
      %v371 = vpop.f32.mrb[0].mxu0
      %v372 = vadd.f32 0.0, %v371
      %v373 = vpop.f32.mrb[0].mxu0
      %374 = vmatprep.mubr.f32.mxu0 0.0
      %375 = vmatmul.mubr.f32.gmra.mrb[0].mxu0 %v204
      %v376 = vpop.f32.mrb[0].mxu0
      %v377 = vadd.f32 0.0, %v376
      %v378 = vpop.f32.mrb[0].mxu0
      %379 = vdwg.mxu0
      %380 = vst [vmem:[%s181] sm:$0xff] %v273
      %381 = vst [vmem:[%s181 + $0x8] sm:$0xff] %v275
      %382 = vst [vmem:[%s181 + $0x10] sm:$0xff] %v362
      %383 = vst [vmem:[%s181 + $0x18] sm:$0xff] %v279
      %384 = vst [vmem:[%s181 + $0x20] sm:$0xff] %v281
      %385 = vst [vmem:[%s181 + $0x28] sm:$0xff] %v367
      %386 = vst [vmem:[%s181 + $0x30] sm:$0xff] %v285
      %387 = vst [vmem:[%s181 + $0x38] sm:$0xff] %v287
      %388 = vst [vmem:[%s181 + $0x40] sm:$0xff] %v372
      %389 = vst [vmem:[%s181 + $0x48] sm:$0xff] %v291
      %390 = vst [vmem:[%s181 + $0x50] sm:$0xff] %v293
      %391 = vst [vmem:[%s181 + $0x58] sm:$0xff] %v377
      %s392 = smul.u32 3, %s18
      %p393 = scmp.lt.s32.totalorder %s17, 1
      %s394 = scalar_select %p393, %s17, 1
      %p395 = scmp.lt.s32.totalorder %s392, 2
      %s396 = scalar_select %p395, %s392, 2
      %s397 = smul.addr %s394, 12
      %s398 = sadd.s32 %s396, %s397
      %s399 = smul.addr %s398, 8
      %s400 = scalar_lea.vmem %s2, %s399
      // Predicated region
      $region29: #{conv_transpose2d.1} parent=27 // pred_check
        %p401 = pneg %p94
      $region30: #{conv_transpose2d.1} parent=27 // pred_check_branch
        %403 = sbr.rel (%p401) target = $region32
      $region31: #{conv_transpose2d.1} parent=27 // pred_region
        %s404 = smul.u32 3, %s18
      $region32: #{conv_transpose2d.1} parent=27 // pred_fallthru
        _
    $region28: #{conv_transpose2d.1} parent=5 // pred_fallthru
      _
    %p405 = scmp.le.s32.totalorder 2, %s8
    // Predicated region
    $region33: #{conv_transpose2d.1} parent=5 // pred_check
      %p406 = pneg %p405
    $region34: #{conv_transpose2d.1} parent=5 // pred_check_branch
      %408 = sbr.rel (%p406) target = $region36
    $region35: #{conv_transpose2d.1} parent=5 // pred_region
      %s409 = ssub.s32 %s8, 2
      // Predicated region
      $region37: #{conv_transpose2d.1} parent=35 // pred_check
        %p410 = pneg %p100
      $region38: #{conv_transpose2d.1} parent=35 // pred_check_branch
        %412 = sbr.rel (%p410) target = $region40
      $region39: #{conv_transpose2d.1} parent=35 // pred_region
        %s413 = smul.u32 3, %s20
        %p414 = scmp.lt.s32.totalorder %s19, 1
        %s415 = scalar_select %p414, %s19, 1
        %p416 = scmp.lt.s32.totalorder %s413, 2
        %s417 = scalar_select %p416, %s413, 2
        %s418 = smul.addr %s415, 12
        %s419 = sadd.s32 %s417, %s418
        %s420 = smul.addr %s419, 8
        %s421 = scalar_lea.vmem %s2, %s420
      $region40: #{conv_transpose2d.1} parent=35 // pred_fallthru
        _
    $region36: #{conv_transpose2d.1} parent=5 // pred_fallthru
      _
  $region6: #{conv_transpose2d.1} parent=0 // loop_footer
    %s12 = sadd.s32 1, %s8
  $region7: #{conv_transpose2d.1} parent=0 // loop_footer_branch
    %7 = sbr.rel target = $region3
  $region8: #{conv_transpose2d.1} parent=0 // loop_exit
    _

</llo_original>
